<compile_context>
chip_gen: v6e
topology: v6e:2x2x1
jax: 0.10.0
libtpu: 0.0.40
codegen_flags: <defaults>
</compile_context>

<pallas_src>
import jax
import jax.numpy as jnp
from jax.experimental import pallas as pl
from jax.experimental.pallas import tpu as pltpu


def _round_up(x, m):
    return (x + m - 1) // m * m


def mlp_kernel(x_ref, w1_ref, b1_ref, w2_ref, b2_ref, o_ref, h_ref):
    # x_ref: [TM, D] (input dtype)   w1_ref: [D, Hp] bf16   b1_ref: [1, Hp] f32
    # w2_ref: [Hp, TN] bf16          b2_ref: [1, TN] f32    o_ref: [TM, TN]
    # h_ref:  [TM, Hp] bf16 scratch, persists across the (inner) class-tile axis.

    # Hidden activations computed once per batch tile (j == 0), reused for all
    # class tiles of that batch tile.
    @pl.when(pl.program_id(1) == 0)
    def _():
        x = x_ref[...].astype(w1_ref.dtype)                      # f32 -> bf16 in-kernel
        h = jnp.dot(x, w1_ref[...], preferred_element_type=jnp.float32)   # MXU, f32 acc
        h_ref[...] = jnp.maximum(h + b1_ref[...], 0.0).astype(h_ref.dtype)  # VPU f32

    y = jnp.dot(h_ref[...], w2_ref[...], preferred_element_type=jnp.float32)
    o_ref[...] = (y + b2_ref[...]).astype(o_ref.dtype)


def prepare_params(w1, b1, w2, b2, *, compute_dtype=jnp.bfloat16):
    """One-time weight prep: pad lane dims (H, C) to multiples of 128, cast to
    bf16 (weights) / f32 (biases).  Zero padding keeps the math exact."""
    D, H = w1.shape
    H2, C = w2.shape
    assert H2 == H
    Hp = _round_up(H, 128)
    Cp = _round_up(C, 128)
    w1p = jnp.pad(w1, ((0, 0), (0, Hp - H))).astype(compute_dtype)
    b1p = jnp.pad(jnp.reshape(b1, (1, H)), ((0, 0), (0, Hp - H))).astype(jnp.float32)
    w2p = jnp.pad(w2, ((0, Hp - H), (0, Cp - C))).astype(compute_dtype)
    b2p = jnp.pad(jnp.reshape(b2, (1, C)), ((0, 0), (0, Cp - C))).astype(jnp.float32)
    return (w1p, b1p, w2p, b2p), C


def mlp_forward(x, params, n_classes, *, block_m=512, block_n=1024,
                out_dtype=jnp.bfloat16):
    """Fused MLP forward.  x: [B, D] (f32 or bf16), params from prepare_params."""
    w1p, b1p, w2p, b2p = params
    B, D = x.shape
    Dw, Hp = w1p.shape
    assert Dw == D, "x feature dim must match prepared w1"
    Cp = w2p.shape[1]
    C = n_classes

    # ---- batch tiling: multiple-of-8 tile, near-full tiles, >=2 grid steps
    # on the parallel axis when the batch allows (v7x megacore). ------------
    TM = min(block_m, _round_up(B, 8))
    num_m = pl.cdiv(B, TM)
    if num_m < 2 and B > 8:
        num_m = 2
    TM = _round_up(pl.cdiv(B, num_m), 8)
    num_m = pl.cdiv(B, TM)

    # ---- class tiling: full Cp when it fits, else 256-multiples (v6e/v7x
    # MXU is 2x256^2; 128-wide operands run it at ~50%). --------------------
    if Cp <= block_n:
        TN = Cp
    else:
        TN = _round_up(block_n, 256)
    num_n = pl.cdiv(Cp, TN)

    x_isz = x.dtype.itemsize
    w_isz = w1p.dtype.itemsize
    o_isz = jnp.dtype(out_dtype).itemsize

    # ---- VMEM budget: actual tile footprint + headroom (not physical max).
    w2_bufs = 1 if num_n == 1 else 2
    need = (2 * TM * D * x_isz            # x, double-buffered
            + 1 * D * Hp * w_isz          # w1, single-buffered (resident)
            + 1 * Hp * 4                  # b1, single-buffered
            + w2_bufs * Hp * TN * w_isz   # w2
            + w2_bufs * TN * 4            # b2
            + 2 * TM * TN * o_isz         # out, double-buffered
            + TM * Hp * w_isz             # bf16 hidden scratch
            + TM * Hp * 4                 # f32 first-matmul intermediate
            + TM * TN * 4)                # f32 second-matmul intermediate
    vmem_limit = int(min(128 * 1024 * 1024,
                         max(32 * 1024 * 1024, need + 8 * 1024 * 1024)))

    def _spec(shape, index_map, single_buffer=False):
        if single_buffer:
            return pl.BlockSpec(shape, index_map, pipeline_mode=pl.Buffered(1))
        return pl.BlockSpec(shape, index_map)

    in_specs = [
        _spec((TM, D), lambda i, j: (i, 0)),                          # x: batch-tiled
        _spec((D, Hp), lambda i, j: (0, 0), single_buffer=True),      # w1: resident
        _spec((1, Hp), lambda i, j: (0, 0), single_buffer=True),      # b1: resident
        _spec((Hp, TN), lambda i, j: (0, j), single_buffer=(num_n == 1)),  # w2
        _spec((1, TN), lambda i, j: (0, j), single_buffer=(num_n == 1)),   # b2
    ]

    cost = pl.CostEstimate(
        flops=2 * B * D * Hp + 2 * B * Hp * Cp,
        transcendentals=0,
        bytes_accessed=int(B * D * x_isz + D * Hp * w_isz + Hp * 4
                           + Hp * Cp * w_isz + Cp * 4 + B * Cp * o_isz),
    )

    out = pl.pallas_call(
        mlp_kernel,
        out_shape=jax.ShapeDtypeStruct((B, Cp), out_dtype),
        grid=(num_m, num_n),
        in_specs=in_specs,
        out_specs=pl.BlockSpec((TM, TN), lambda i, j: (i, j)),
        scratch_shapes=[pltpu.VMEM((TM, Hp), w1p.dtype)],
        compiler_params=pltpu.CompilerParams(
            dimension_semantics=("parallel", "arbitrary"),
            vmem_limit_bytes=vmem_limit,
        ),
        cost_estimate=cost,
    )(x, w1p, b1p, w2p, b2p)

    return out[:, :C]


def init_params(key, input_size, n_hidden, n_classes):
    # Deterministic init mimicking PyTorch nn.Linear: U(-1/sqrt(fan_in), +1/sqrt(fan_in))
    k1, k2, k3, k4 = jax.random.split(key, 4)
    bound1 = 1.0 / jnp.sqrt(input_size)
    bound2 = 1.0 / jnp.sqrt(n_hidden)
    w1 = jax.random.uniform(k1, (input_size, n_hidden), jnp.float32, -bound1, bound1)
    b1 = jax.random.uniform(k2, (1, n_hidden), jnp.float32, -bound1, bound1)
    w2 = jax.random.uniform(k3, (n_hidden, n_classes), jnp.float32, -bound2, bound2)
    b2 = jax.random.uniform(k4, (1, n_classes), jnp.float32, -bound2, bound2)
    return w1, b1, w2, b2


if __name__ == "__main__":
    input_size, n_hidden, n_classes = 32, 64, 16
    batch = 8

    key = jax.random.PRNGKey(0)
    kx, kp = jax.random.split(key)
    x = jax.random.normal(kx, (batch, input_size), jnp.float32)
    w1, b1, w2, b2 = init_params(kp, input_size, n_hidden, n_classes)

    # One-time weight prep (pad + cast), hoisted out of the forward.
    params, C = prepare_params(w1, b1, w2, b2)

    # f32 output path: tight check against a reference that mirrors the
    # kernel's bf16 rounding of MXU inputs.
    out_f32 = mlp_forward(x, params, C, out_dtype=jnp.float32)
    out_f32 = jax.block_until_ready(out_f32)
    assert out_f32.shape == (batch, n_classes)

    xb = x.astype(jnp.bfloat16).astype(jnp.float32)
    w1b = w1.astype(jnp.bfloat16).astype(jnp.float32)
    w2b = w2.astype(jnp.bfloat16).astype(jnp.float32)
    h_ref = jnp.maximum(xb @ w1b + b1, 0.0)
    ref_bf = h_ref.astype(jnp.bfloat16).astype(jnp.float32) @ w2b + b2
    assert jnp.allclose(out_f32, ref_bf, atol=1e-4, rtol=1e-4)

    # Default (bf16) output path: loose check against pure-f32 module semantics.
    out_bf16 = mlp_forward(x, params, C)
    out_bf16 = jax.block_until_ready(out_bf16)
    assert out_bf16.shape == (batch, n_classes)
    ref_f32 = jnp.maximum(x @ w1 + b1, 0.0) @ w2 + b2
    assert jnp.allclose(out_bf16.astype(jnp.float32), ref_f32, atol=5e-2, rtol=5e-2)

    print("KERNEL_OK")
</pallas_src>

<mosaic_0001>
module attributes {stable_mosaic.version = 11 : i64} {
  func.func @mlp_kernel(%arg0: i32, %arg1: i32, %arg2: memref<8x32xf32, #tpu.memory_space<vmem>>, %arg3: memref<32x128xbf16, #tpu.memory_space<vmem>>, %arg4: memref<1x128xf32, #tpu.memory_space<vmem>>, %arg5: memref<128x128xbf16, #tpu.memory_space<vmem>>, %arg6: memref<1x128xf32, #tpu.memory_space<vmem>>, %arg7: memref<8x128xf32, #tpu.memory_space<vmem>>, %arg8: memref<8x128xbf16, #tpu.memory_space<vmem>>) attributes {dimension_semantics = [#tpu.dimension_semantics<parallel>, #tpu.dimension_semantics<arbitrary>], iteration_bounds = array<i64: 1, 1>, scalar_prefetch = 0 : i64, scratch_operands = 1 : i64, tpu.core_type = #tpu.core_type<tc>, window_params = [{transform_indices = @transform_0, window_bounds = array<i64: 8, 32>}, {pipeline_mode = #tpu.pipeline_mode<synchronous>, transform_indices = @transform_1, window_bounds = array<i64: 32, 128>}, {pipeline_mode = #tpu.pipeline_mode<synchronous>, transform_indices = @transform_2, window_bounds = array<i64: 1, 128>}, {pipeline_mode = #tpu.pipeline_mode<synchronous>, transform_indices = @transform_3, window_bounds = array<i64: 128, 128>}, {pipeline_mode = #tpu.pipeline_mode<synchronous>, transform_indices = @transform_4, window_bounds = array<i64: 1, 128>}, {transform_indices = @transform_5, window_bounds = array<i64: 8, 128>}]} {
    %c0_i32 = arith.constant 0 : i32
    %0 = arith.cmpi eq, %arg1, %c0_i32 : i32
    %1 = arith.extui %0 : i1 to i32
    %c0_i32_0 = arith.constant 0 : i32
    %2 = arith.cmpi ne, %1, %c0_i32_0 : i32
    scf.if %2 {
      %c0_8 = arith.constant 0 : index
      %c0_9 = arith.constant 0 : index
      %10 = vector.load %arg2[%c0_8, %c0_9] : memref<8x32xf32, #tpu.memory_space<vmem>>, vector<8x32xf32>
      %11 = arith.truncf %10 : vector<8x32xf32> to vector<8x32xbf16>
      %c0_10 = arith.constant 0 : index
      %c0_11 = arith.constant 0 : index
      %12 = vector.load %arg3[%c0_10, %c0_11] : memref<32x128xbf16, #tpu.memory_space<vmem>>, vector<32x128xbf16>
      %cst_12 = arith.constant dense<0.000000e+00> : vector<8x128xf32>
      %13 = tpu.matmul %11, %12, %cst_12 {dimension_numbers = #tpu.dot_dimension_numbers<[1], [0], [0], [1], [0, 0, 1, 1], [], []>} : vector<8x32xbf16>, vector<32x128xbf16>, vector<8x128xf32> -> vector<8x128xf32>
      %c0_13 = arith.constant 0 : index
      %c0_14 = arith.constant 0 : index
      %14 = vector.load %arg4[%c0_13, %c0_14] : memref<1x128xf32, #tpu.memory_space<vmem>>, vector<1x128xf32>
      %15 = vector.broadcast %14 : vector<1x128xf32> to vector<8x128xf32>
      %16 = arith.addf %13, %15 : vector<8x128xf32>
      %cst_15 = arith.constant 0.000000e+00 : f32
      %17 = vector.broadcast %cst_15 : f32 to vector<8x128xf32>
      %18 = arith.maximumf %16, %17 : vector<8x128xf32>
      %19 = arith.truncf %18 : vector<8x128xf32> to vector<8x128xbf16>
      %c0_16 = arith.constant 0 : index
      %c0_17 = arith.constant 0 : index
      %20 = vector.load %arg8[%c0_16, %c0_17] : memref<8x128xbf16, #tpu.memory_space<vmem>>, vector<8x128xbf16>
      tpu.vector_store %arg8[%c0_16, %c0_17], %19 {strides = array<i32>} : memref<8x128xbf16, #tpu.memory_space<vmem>>, vector<8x128xbf16>,
    } else {
    }
    %c0 = arith.constant 0 : index
    %c0_1 = arith.constant 0 : index
    %3 = vector.load %arg8[%c0, %c0_1] : memref<8x128xbf16, #tpu.memory_space<vmem>>, vector<8x128xbf16>
    %c0_2 = arith.constant 0 : index
    %c0_3 = arith.constant 0 : index
    %4 = vector.load %arg5[%c0_2, %c0_3] : memref<128x128xbf16, #tpu.memory_space<vmem>>, vector<128x128xbf16>
    %cst = arith.constant dense<0.000000e+00> : vector<8x128xf32>
    %5 = tpu.matmul %3, %4, %cst {dimension_numbers = #tpu.dot_dimension_numbers<[1], [0], [0], [1], [0, 0, 1, 1], [], []>} : vector<8x128xbf16>, vector<128x128xbf16>, vector<8x128xf32> -> vector<8x128xf32>
    %c0_4 = arith.constant 0 : index
    %c0_5 = arith.constant 0 : index
    %6 = vector.load %arg6[%c0_4, %c0_5] : memref<1x128xf32, #tpu.memory_space<vmem>>, vector<1x128xf32>
    %7 = vector.broadcast %6 : vector<1x128xf32> to vector<8x128xf32>
    %8 = arith.addf %5, %7 : vector<8x128xf32>
    %c0_6 = arith.constant 0 : index
    %c0_7 = arith.constant 0 : index
    %9 = vector.load %arg7[%c0_6, %c0_7] : memref<8x128xf32, #tpu.memory_space<vmem>>, vector<8x128xf32>
    tpu.vector_store %arg7[%c0_6, %c0_7], %8 {strides = array<i32>} : memref<8x128xf32, #tpu.memory_space<vmem>>, vector<8x128xf32>,
    return
  }
  func.func @transform_0(%arg0: i32, %arg1: i32) -> (i32, i32) {
    %c0_i32 = arith.constant 0 : i32
    %c0_i32_0 = arith.constant 0 : i32
    return %arg0, %c0_i32 : i32, i32
  }
  func.func @transform_1(%arg0: i32, %arg1: i32) -> (i32, i32) {
    %c0_i32 = arith.constant 0 : i32
    %c0_i32_0 = arith.constant 0 : i32
    %c0_i32_1 = arith.constant 0 : i32
    return %c0_i32, %c0_i32_0 : i32, i32
  }
  func.func @transform_2(%arg0: i32, %arg1: i32) -> (i32, i32) {
    %c0_i32 = arith.constant 0 : i32
    %c0_i32_0 = arith.constant 0 : i32
    %c0_i32_1 = arith.constant 0 : i32
    return %c0_i32, %c0_i32_0 : i32, i32
  }
  func.func @transform_3(%arg0: i32, %arg1: i32) -> (i32, i32) {
    %c0_i32 = arith.constant 0 : i32
    %c0_i32_0 = arith.constant 0 : i32
    return %c0_i32, %arg1 : i32, i32
  }
  func.func @transform_4(%arg0: i32, %arg1: i32) -> (i32, i32) {
    %c0_i32 = arith.constant 0 : i32
    %c0_i32_0 = arith.constant 0 : i32
    return %c0_i32, %arg1 : i32, i32
  }
  func.func @transform_5(%arg0: i32, %arg1: i32) -> (i32, i32) {
    %c0_i32 = arith.constant 0 : i32
    return %arg0, %arg1 : i32, i32
  }
}

</mosaic_0001>

<llo_original>
// kernel: tpu_custom_call.1
$region0: #{tpu_custom_call.1}
  #allocation0 [shape = 'u32[]', space=smem, size = 0x4, offset = 0x4, fixed_abs, tag = 'smem constant byte address 0x4 - core index']
  #allocation1 [shape = 'u32[144,128]{1,0:T(1,128)}', space=vmem, size = 0x12000, scoped, tag = 'internal scratch']
  #allocation2 [shape = 'bf16[8,128]{1,0:T(8,128)(2,1)}', space=vmem, size = 0x800, scoped, tag = 'scratch operand']
  %s0 = inlined_call_operand.hbm [shape: f32[8,32], index: 0, kind: input, shape index: {}]
  %s1 = inlined_call_operand.hbm [shape: bf16[32,128], index: 1, kind: input, shape index: {}]
  %s2 = inlined_call_operand.vmem [shape: f32[1,128], index: 2, kind: input, shape index: {}]
  %s3 = inlined_call_operand.hbm [shape: bf16[128,128], index: 3, kind: input, shape index: {}]
  %s4 = inlined_call_operand.vmem [shape: f32[1,128], index: 4, kind: input, shape index: {}]
  %s5 = inlined_call_operand.hbm [shape: f32[8,128], index: 5, kind: output, shape index: {}]
  %s6 = sld [smem:[#allocation0]]
  $region46: #{tpu_custom_call.1} parent=0
    _
  %s8 = ssub.s32 1, %s6
  %s9 = scalar_select 0, %s8, %s6
  $region1: #{tpu_custom_call.1} parent=0
    #allocation3 [shape = 'u8[4096]{0}', space=vmem, size = 0x1000, scoped, tag = 'input window, operand 0, single buffered']
    #allocation4 [shape = 's32[1]{0}', space=sflag, size = 0x4, scoped, tag = 'scoped memory for tpu_custom_call.1']
    #allocation5 [shape = 's32[1]{0}', space=sflag, size = 0x4, scoped, tag = 'scoped memory for tpu_custom_call.1']
    #allocation6 [shape = 'u8[8192]{0}', space=vmem, size = 0x2000, scoped, tag = 'input window, operand 1, single buffered']
    #allocation7 [shape = 's32[1]{0}', space=sflag, size = 0x4, scoped, tag = 'scoped memory for tpu_custom_call.1']
    #allocation8 [shape = 'u8[32768]{0}', space=vmem, size = 0x8000, scoped, tag = 'input window, operand 3, single buffered']
    #allocation9 [shape = 'u8[4096]{0}', space=vmem, size = 0x1000, scoped, tag = 'output window, operand 0, single buffered']
    %10 = vsyncpa [#allocation4], 0
    %11 = vsyncpa [#allocation7], 0
    %12 = vsyncpa [#allocation5], 0
    // Predicated region
    $region2: #{tpu_custom_call.1} parent=1 // pred_check
      _
    $region3: #{tpu_custom_call.1} parent=1 // pred_check_branch
      %14 = sbr.rel (0) target = $region5
    $region4: #{tpu_custom_call.1} parent=1 // pred_region
      %s16 = ssub.s32 128, 128
      %17 = vsyncadd [#allocation4], %s16
      %s19 = sshll.u32 [#allocation3], 4
      %s20 = int_to_ptr.vmem [resolvable:$true] %s19
      %22 = dma.hbm_to_vmem [thread:$0]  %s0, 128, %s20, [#allocation4]
    $region5: #{tpu_custom_call.1} parent=1 // pred_fallthru
      _
    // Predicated region
    $region6: #{tpu_custom_call.1} parent=1 // pred_check
      _
    $region7: #{tpu_custom_call.1} parent=1 // pred_check_branch
      %24 = sbr.rel (0) target = $region9
    $region8: #{tpu_custom_call.1} parent=1 // pred_region
      %s26 = ssub.s32 256, 256
      %27 = vsyncadd [#allocation7], %s26
      %s28 = sshll.u32 [#allocation6], 4
      %s29 = int_to_ptr.vmem [resolvable:$true] %s28
      %34 = dma.hbm_to_vmem [thread:$0]  %s1, 256, %s29, [#allocation7], 64, 64, 4
    $region9: #{tpu_custom_call.1} parent=1 // pred_fallthru
      _
    // Predicated region
    $region10: #{tpu_custom_call.1} parent=1 // pred_check
      _
    $region11: #{tpu_custom_call.1} parent=1 // pred_check_branch
      %36 = sbr.rel (0) target = $region13
    $region12: #{tpu_custom_call.1} parent=1 // pred_region
      _
    $region13: #{tpu_custom_call.1} parent=1 // pred_fallthru
      _
    // Predicated region
    $region14: #{tpu_custom_call.1} parent=1 // pred_check
      _
    $region15: #{tpu_custom_call.1} parent=1 // pred_check_branch
      %38 = sbr.rel (0) target = $region17
    $region16: #{tpu_custom_call.1} parent=1 // pred_region
      %s40 = ssub.s32 1024, 1024
      %41 = vsyncadd [#allocation7], %s40
      %s42 = sshll.u32 [#allocation8], 4
      %s43 = int_to_ptr.vmem [resolvable:$true] %s42
      %48 = dma.hbm_to_vmem [thread:$0]  %s3, 1024, %s43, [#allocation7], 64, 64, 4
    $region17: #{tpu_custom_call.1} parent=1 // pred_fallthru
      _
    // Predicated region
    $region18: #{tpu_custom_call.1} parent=1 // pred_check
      _
    $region19: #{tpu_custom_call.1} parent=1 // pred_check_branch
      %50 = sbr.rel (0) target = $region21
    $region20: #{tpu_custom_call.1} parent=1 // pred_region
      _
    $region21: #{tpu_custom_call.1} parent=1 // pred_fallthru
      _
    // Predicated region
    $region22: #{tpu_custom_call.1} parent=1 // pred_check
      _
    $region23: #{tpu_custom_call.1} parent=1 // pred_check_branch
      %52 = sbr.rel (0) target = $region25
    $region24: #{tpu_custom_call.1} parent=1 // pred_region
      %53 = dma.done [#allocation4], 128
    $region25: #{tpu_custom_call.1} parent=1 // pred_fallthru
      _
    // Predicated region
    $region26: #{tpu_custom_call.1} parent=1 // pred_check
      _
    $region27: #{tpu_custom_call.1} parent=1 // pred_check_branch
      %55 = sbr.rel (0) target = $region29
    $region28: #{tpu_custom_call.1} parent=1 // pred_region
      %56 = dma.done [#allocation7], 256
    $region29: #{tpu_custom_call.1} parent=1 // pred_fallthru
      _
    // Predicated region
    $region30: #{tpu_custom_call.1} parent=1 // pred_check
      _
    $region31: #{tpu_custom_call.1} parent=1 // pred_check_branch
      %58 = sbr.rel (0) target = $region33
    $region32: #{tpu_custom_call.1} parent=1 // pred_region
      %59 = dma.done [#allocation7], 1024
    $region33: #{tpu_custom_call.1} parent=1 // pred_fallthru
      _
    %p61 = scmp.eq.s32.totalorder 0, 0
    // Predicated region
    $region34: #{tpu_custom_call.1} parent=1 // pred_check
      %p62 = pneg %p61
    $region35: #{tpu_custom_call.1} parent=1 // pred_check_branch
      %64 = sbr.rel (%p62) target = $region37
    $region36: #{tpu_custom_call.1} parent=1 // pred_region
      %v65 = vld [vmem:[#allocation3] sm:$0xff]
      %v66 = vpack.c.bf16 %v65, %v65
      %v67 = vld [vmem:[#allocation6] sm:$0xf]
      %v68 = vld [vmem:[#allocation6 + $0x4] sm:$0xf]
      %v69 = vld [vmem:[#allocation6 + $0x8] sm:$0xf]
      %v70 = vld [vmem:[#allocation6 + $0xc] sm:$0xf]
      %v71 = vld [vmem:[%s2] sm:$0x1]
      %v73 = vlaneseq
      %v74 = vshrl.u32 %v73, 7
      %v75 = vsub.s32 0, %v74
      %v76 = vrot.slane %v71, %v75
      %v82 = vunpack.c.l.b16 %v67
      %v83 = vunpack.c.l.b16 %v68
      %v84 = vunpack.c.l.b16 %v69
      %v85 = vunpack.c.l.b16 %v70
      %v86 = vpack.c.b16 %v83, %v82
      %v87 = vpack.c.b16 %v85, %v84
      %vm90 = vcmask 261120
      %v92 = vsel %vm90, %v66, 0
      %94 = vmatprep.subr.bf16.mxu0 0
      %95 = vmatpush1.bf16.msra.mxu0 0
      %96 = vmatprep.subr.bf16.mxu0 0
      %97 = vmatpush1.bf16.msra.mxu0 0
      %98 = vmatprep.subr.bf16.mxu0 0
      %99 = vmatpush1.bf16.msra.mxu0 0
      %100 = vmatprep.subr.bf16.mxu0 0
      %101 = vmatpush1.bf16.msra.mxu0 0
      %102 = vmatprep.subr.bf16.mxu0 0
      %103 = vmatpush1.bf16.msra.mxu0 0
      %104 = vmatprep.subr.bf16.mxu0 0
      %105 = vmatpush1.bf16.msra.mxu0 0
      %106 = vmatprep.subr.bf16.mxu0 0
      %107 = vmatpush1.bf16.msra.mxu0 %v87
      %108 = vmatprep.subr.bf16.mxu0 0
      %109 = vmatpush1.bf16.msra.mxu0 %v86
      %110 = vmatprep.subr.bf16.mxu0 0
      %111 = vmatpush2.bf16.msra.mxu0 0
      %112 = vmatprep.subr.bf16.mxu0 0
      %113 = vmatpush2.bf16.msra.mxu0 0
      %114 = vmatprep.subr.bf16.mxu0 0
      %115 = vmatpush2.bf16.msra.mxu0 0
      %116 = vmatprep.subr.bf16.mxu0 0
      %117 = vmatpush2.bf16.msra.mxu0 0
      %118 = vmatprep.subr.bf16.mxu0 0
      %119 = vmatpush2.bf16.msra.mxu0 0
      %120 = vmatprep.subr.bf16.mxu0 0
      %121 = vmatpush2.bf16.msra.mxu0 0
      %122 = vmatprep.subr.bf16.mxu0 0
      %123 = vmatpush2.bf16.msra.mxu0 0
      %124 = vmatprep.subr.bf16.mxu0 0
      %125 = vmatpush2.bf16.msra.mxu0 0
      %126 = vmatprep.mubr.bf16.mxu0 0
      %127 = vmatmul.mubr.bf16.gmra.mxu0 %v92
      %v128 = vpop.f32.mrf.mxu0
      %v129 = vadd.f32 %v76, %v128
      %v130 = vpop.f32.mrf.mxu0
      %v131 = vpop.f32.mrf.mxu0
      %v132 = vpop.f32.mrf.mxu0
      %133 = vdwg.mxu0
      %v134 = vmax.f32 %v129, 0.0
      %v135 = vpack.c.bf16 %v134, %v134
      %136 = vst [vmem:[#allocation2] sm:$0xf] %v135
    $region37: #{tpu_custom_call.1} parent=1 // pred_fallthru
      _
    %v137 = vld [vmem:[#allocation2] sm:$0xf]
    %v138 = vld [vmem:[#allocation8] sm:$0xf]
    %v139 = vld [vmem:[#allocation8 + $0x4] sm:$0xf]
    %v140 = vld [vmem:[#allocation8 + $0x8] sm:$0xf]
    %v141 = vld [vmem:[#allocation8 + $0xc] sm:$0xf]
    %v142 = vld [vmem:[#allocation8 + $0x10] sm:$0xf]
    %v143 = vld [vmem:[#allocation8 + $0x14] sm:$0xf]
    %v144 = vld [vmem:[#allocation8 + $0x18] sm:$0xf]
    %v145 = vld [vmem:[#allocation8 + $0x1c] sm:$0xf]
    %v146 = vld [vmem:[#allocation8 + $0x20] sm:$0xf]
    %v147 = vld [vmem:[#allocation8 + $0x24] sm:$0xf]
    %v148 = vld [vmem:[#allocation8 + $0x28] sm:$0xf]
    %v149 = vld [vmem:[#allocation8 + $0x2c] sm:$0xf]
    %v150 = vld [vmem:[#allocation8 + $0x30] sm:$0xf]
    %v151 = vld [vmem:[#allocation8 + $0x34] sm:$0xf]
    %v152 = vld [vmem:[#allocation8 + $0x38] sm:$0xf]
    %v153 = vld [vmem:[#allocation8 + $0x3c] sm:$0xf]
    %v154 = vld [vmem:[%s4] sm:$0x1]
    %v156 = vlaneseq
    %v157 = vshrl.u32 %v156, 7
    %v158 = vsub.s32 0, %v157
    %v159 = vrot.slane %v154, %v158
    %v177 = vunpack.c.l.b16 %v138
    %v178 = vunpack.c.l.b16 %v139
    %v179 = vunpack.c.l.b16 %v140
    %v180 = vunpack.c.l.b16 %v141
    %v181 = vunpack.c.l.b16 %v142
    %v182 = vunpack.c.l.b16 %v143
    %v183 = vunpack.c.l.b16 %v144
    %v184 = vunpack.c.l.b16 %v145
    %v185 = vunpack.c.l.b16 %v146
    %v186 = vunpack.c.l.b16 %v147
    %v187 = vunpack.c.l.b16 %v148
    %v188 = vunpack.c.l.b16 %v149
    %v189 = vunpack.c.l.b16 %v150
    %v190 = vunpack.c.l.b16 %v151
    %v191 = vunpack.c.l.b16 %v152
    %v192 = vunpack.c.l.b16 %v153
    %v193 = vpack.c.b16 %v178, %v177
    %v194 = vpack.c.b16 %v180, %v179
    %v195 = vpack.c.b16 %v182, %v181
    %v196 = vpack.c.b16 %v184, %v183
    %v197 = vpack.c.b16 %v186, %v185
    %v198 = vpack.c.b16 %v188, %v187
    %v199 = vpack.c.b16 %v190, %v189
    %v200 = vpack.c.b16 %v192, %v191
    %209 = vmatprep.subr.bf16.mxu0 0
    %210 = vmatpush1.bf16.msra.mxu0 %v200
    %211 = vmatprep.subr.bf16.mxu0 0
    %212 = vmatpush1.bf16.msra.mxu0 %v199
    %213 = vmatprep.subr.bf16.mxu0 0
    %214 = vmatpush1.bf16.msra.mxu0 %v198
    %215 = vmatprep.subr.bf16.mxu0 0
    %216 = vmatpush1.bf16.msra.mxu0 %v197
    %217 = vmatprep.subr.bf16.mxu0 0
    %218 = vmatpush1.bf16.msra.mxu0 %v196
    %219 = vmatprep.subr.bf16.mxu0 0
    %220 = vmatpush1.bf16.msra.mxu0 %v195
    %221 = vmatprep.subr.bf16.mxu0 0
    %222 = vmatpush1.bf16.msra.mxu0 %v194
    %223 = vmatprep.subr.bf16.mxu0 0
    %224 = vmatpush1.bf16.msra.mxu0 %v193
    %225 = vmatprep.subr.bf16.mxu0 0
    %226 = vmatpush2.bf16.msra.mxu0 0
    %227 = vmatprep.subr.bf16.mxu0 0
    %228 = vmatpush2.bf16.msra.mxu0 0
    %229 = vmatprep.subr.bf16.mxu0 0
    %230 = vmatpush2.bf16.msra.mxu0 0
    %231 = vmatprep.subr.bf16.mxu0 0
    %232 = vmatpush2.bf16.msra.mxu0 0
    %233 = vmatprep.subr.bf16.mxu0 0
    %234 = vmatpush2.bf16.msra.mxu0 0
    %235 = vmatprep.subr.bf16.mxu0 0
    %236 = vmatpush2.bf16.msra.mxu0 0
    %237 = vmatprep.subr.bf16.mxu0 0
    %238 = vmatpush2.bf16.msra.mxu0 0
    %239 = vmatprep.subr.bf16.mxu0 0
    %240 = vmatpush2.bf16.msra.mxu0 0
    %241 = vmatprep.mubr.bf16.mxu0 0
    %242 = vmatmul.mubr.bf16.gmra.mxu0 %v137
    %v243 = vpop.f32.mrf.mxu0
    %v244 = vadd.f32 %v159, %v243
    %v245 = vpop.f32.mrf.mxu0
    %v246 = vpop.f32.mrf.mxu0
    %v247 = vpop.f32.mrf.mxu0
    %248 = vdwg.mxu0
    %249 = vst [vmem:[#allocation9] sm:$0xff] %v244
    // Predicated region
    $region38: #{tpu_custom_call.1} parent=1 // pred_check
      _
    $region39: #{tpu_custom_call.1} parent=1 // pred_check_branch
      %251 = sbr.rel (0) target = $region41
    $region40: #{tpu_custom_call.1} parent=1 // pred_region
      %s253 = ssub.s32 128, 128
      %254 = vsyncadd [#allocation5], %s253
      %s256 = sshll.u32 [#allocation9], 4
      %s257 = int_to_ptr.vmem [resolvable:$true] %s256
      %259 = dma.vmem_to_hbm [thread:$0]  %s257, 128, %s5, [#allocation5]
    $region41: #{tpu_custom_call.1} parent=1 // pred_fallthru
      _
    // Predicated region
    $region42: #{tpu_custom_call.1} parent=1 // pred_check
      _
    $region43: #{tpu_custom_call.1} parent=1 // pred_check_branch
      %261 = sbr.rel (0) target = $region45
    $region44: #{tpu_custom_call.1} parent=1 // pred_region
      %262 = dma.done [#allocation5], 128
    $region45: #{tpu_custom_call.1} parent=1 // pred_fallthru
      _
    %263 = vsyncpa [#allocation4], 1
    %264 = vsyncpa [#allocation7], 1
    %265 = vsyncpa [#allocation5], 1

</llo_original>
